<compile_context>
chip_gen: v7x
topology: tpu7x:2x2x1
jax: 0.10.0
libtpu: 0.0.40
codegen_flags: <defaults>
</compile_context>

<pallas_src>
import functools

import jax
import jax.numpy as jnp
from jax.experimental import pallas as pl
from jax.experimental.pallas import tpu as pltpu

_LANES = 128


def _sums_kernel(x_ref, t_ref, out_ref, *, n_classes, mask_pad):
    """Per-(batch, row-tile) partial sums; one full-block write per grid step.

    x_ref:   (1, C, TH, 128)   logits (any float dtype; upcast in-register)
    t_ref:   (1, TH, 128)      int8/int32 labels (padded pixels hold sentinel C)
    out_ref: (1, 1, 4*C, 128)  rows [0:C)   = sum(p * onehot)
                               rows [C:2C)  = sum(p * p)
                               rows [2C:3C) = sum(onehot)
                               rows [3C:4C) = sum(onehot * (lse - x))
    """
    x = x_ref[...].astype(jnp.float32)              # (1, C, TH, 128)
    t = t_ref[...].astype(jnp.int32)                # (1, TH, 128)

    # Numerically-stable softmax / logsumexp over the class axis (axis=1).
    m = jnp.max(x, axis=1)                          # (1, TH, 128)
    e = jnp.exp(x - m[:, None, :, :])               # (1, C, TH, 128)  (EUP)
    s = jnp.sum(e, axis=1)                          # (1, TH, 128)
    inv_s = pl.reciprocal(s, approx=True)           # divide on the EUP slot
    lse = m + jnp.log(s)                            # (1, TH, 128)

    if mask_pad:
        # Padded pixels carry the sentinel label `n_classes`; zeroing inv_s
        # kills their contribution to sum(p*p). Every other partial sum is
        # gated by the per-class (t == c) masks, which the sentinel never hits.
        inv_s = jnp.where(t < n_classes, inv_s, 0.0)

    inter_rows, z_rows, y_rows, ce_rows = [], [], [], []
    for c in range(n_classes):                      # static loop, C small
        x_c = x[:, c]                               # (1, TH, 128)
        p_c = e[:, c] * inv_s
        m_c = t == c
        inter_rows.append(jnp.sum(jnp.where(m_c, p_c, 0.0), axis=1))       # (1,128)
        z_rows.append(jnp.sum(p_c * p_c, axis=1))
        y_rows.append(jnp.sum(jnp.where(m_c, 1.0, 0.0), axis=1))
        ce_rows.append(jnp.sum(jnp.where(m_c, lse - x_c, 0.0), axis=1))

    packed = jnp.concatenate(inter_rows + z_rows + y_rows + ce_rows, axis=0)
    out_ref[...] = packed.reshape(out_ref.shape)    # (1, 1, 4*C, 128) full store


def _pick_tiling(n_rows, n_classes, itemsize, n_batch, target_bytes=2 << 20):
    """Pick row-tile size TH and the padded row count.

    TH is a multiple of 32 (safe sublane alignment for f32/bf16 logits and
    int8 labels) or equal to the padded row count (full-dim blocks are exempt
    from the alignment rule). The logits block stays under ~target_bytes so the
    double-buffered working set + in-kernel temporaries fit every generation.
    """
    cap = max(32, target_bytes // (itemsize * n_classes * _LANES))
    if n_rows <= cap:
        if n_batch >= 2 or n_rows < 64:
            return n_rows, n_rows
        # Batch alone can't feed both v7x TensorCores: split the rows if a
        # clean (unpadded) 32-aligned divisor exists, otherwise keep one tile.
        best = None
        d = 32
        while 2 * d <= n_rows and d <= cap:
            if n_rows % d == 0:
                best = d
            d += 32
        return (best, n_rows) if best is not None else (n_rows, n_rows)
    # Multi-tile: prefer a 32-aligned divisor (no padding), else pad the rows.
    best = None
    d = 32
    while d <= cap:
        if n_rows % d == 0:
            best = d
        d += 32
    if best is not None:
        return best, n_rows
    th = (cap // 32) * 32
    return th, -(-n_rows // th) * th


@functools.partial(jax.jit, static_argnames=("tile_rows",))
def edice_loss_full(inputs, target, tile_rows=None):
    """Pallas implementation of EDiceLoss_full.forward(inputs, target,
    logits='softmax', uce=True) with weight=None, mask=None."""
    N, C, H, W = inputs.shape
    assert target.shape == (N, H, W), (inputs.shape, target.shape)

    itemsize = jnp.dtype(inputs.dtype).itemsize
    n_pix = H * W
    n_rows = -(-n_pix // _LANES)

    if tile_rows is None:
        th, rows_pad = _pick_tiling(n_rows, C, itemsize, N)
    else:
        th = int(tile_rows)
        rows_pad = -(-n_rows // th) * th
    sub = {4: 8, 2: 16, 1: 32}.get(itemsize, 8)
    assert rows_pad % th == 0 and (th % sub == 0 or th == rows_pad), (th, rows_pad)

    pix_pad = rows_pad * _LANES
    mask_pad = pix_pad > n_pix

    # Lane-dense spatial layout: (H, W) -> (rows, 128). Zero-copy reshape when
    # H*W is a multiple of 128; otherwise pad pixels (labels get the sentinel
    # class C so they never match a real class inside the kernel).
    x_flat = inputs.reshape(N, C, n_pix)
    t_flat = target.astype(jnp.int32).reshape(N, n_pix)
    if mask_pad:
        x_flat = jnp.pad(x_flat, ((0, 0), (0, 0), (0, pix_pad - n_pix)))
        t_flat = jnp.pad(t_flat, ((0, 0), (0, pix_pad - n_pix)), constant_values=C)
    # Small label dtype: 4x less label HBM traffic; needs 32-aligned or
    # full-dim row tiles (guaranteed above), otherwise fall back to int32.
    t_dtype = jnp.int8 if (C <= 127 and (th % 32 == 0 or th == rows_pad)) else jnp.int32
    x_r = x_flat.reshape(N, C, rows_pad, _LANES)
    t_r = t_flat.astype(t_dtype).reshape(N, rows_pad, _LANES)

    grid = (N, rows_pad // th)

    # Explicit scoped-VMEM budget: double-buffered input/label/output blocks
    # plus the block-sized f32 temporaries (x upcast, e, per-class slices).
    blk_in = C * th * _LANES * itemsize
    blk_t = th * _LANES * jnp.dtype(t_dtype).itemsize
    blk_out = 4 * C * _LANES * 4
    blk_f32 = C * th * _LANES * 4
    vmem_limit = 2 * (blk_in + blk_t + blk_out) + 4 * blk_f32 + (2 << 20)
    vmem_limit = int(min(max(vmem_limit, 32 << 20), 48 << 20))

    kernel = functools.partial(_sums_kernel, n_classes=C, mask_pad=mask_pad)
    partial_sums = pl.pallas_call(
        kernel,
        out_shape=jax.ShapeDtypeStruct((N, grid[1], 4 * C, _LANES), jnp.float32),
        grid_spec=pltpu.PrefetchScalarGridSpec(
            num_scalar_prefetch=0,
            grid=grid,
            in_specs=[
                pl.BlockSpec((1, C, th, _LANES), lambda n, h: (n, 0, h, 0)),
                pl.BlockSpec((1, th, _LANES), lambda n, h: (n, h, 0)),
            ],
            out_specs=pl.BlockSpec((1, 1, 4 * C, _LANES), lambda n, h: (n, h, 0, 0)),
        ),
        compiler_params=pltpu.CompilerParams(
            dimension_semantics=("parallel", "parallel"),
            vmem_limit_bytes=vmem_limit,
        ),
    )(x_r, t_r)

    # Tiny final combine in plain JAX: reduce batch / row-tile / lane axes.
    sums = jnp.sum(partial_sums, axis=(0, 1, 3))            # (4*C,)
    inter = sums[0:C]
    z_sum = sums[C:2 * C]
    y_sum = sums[2 * C:3 * C]
    ce_sum = jnp.sum(sums[3 * C:4 * C])

    smooth = 1e-05
    dice_c = 1.0 - (2.0 * inter + smooth) / (z_sum + y_sum + smooth)
    dice = jnp.mean(dice_c)                                  # DiceLoss: mean over classes
    ce = ce_sum / jnp.float32(N * H * W)                     # CrossEntropyLoss(reduction='mean')
    return dice + ce
    # TODO(synk): non-default branches (logits='extend'/'sigmoid', per-class
    # weights, explicit mask, uce=False) are not implemented; defaults only.


def _reference(inputs, target):
    """Pure-JAX reference mirroring the PyTorch module (default args)."""
    x = inputs.astype(jnp.float32)
    N, C, H, W = x.shape
    t = target.astype(jnp.int32)
    p = jax.nn.softmax(x, axis=1)
    oh = jax.nn.one_hot(t, C, axis=1, dtype=jnp.float32)     # (N, C, H, W)
    smooth = 1e-05
    inter = jnp.sum(p * oh, axis=(0, 2, 3))
    z = jnp.sum(p * p, axis=(0, 2, 3))
    y = jnp.sum(oh * oh, axis=(0, 2, 3))
    dice = jnp.mean(1.0 - (2.0 * inter + smooth) / (z + y + smooth))
    lse = jax.scipy.special.logsumexp(x, axis=1)             # (N, H, W)
    x_t = jnp.take_along_axis(x, t[:, None, :, :], axis=1)[:, 0]
    ce = jnp.mean(lse - x_t)
    return dice + ce


if __name__ == "__main__":
    key = jax.random.PRNGKey(0)
    keys = jax.random.split(key, 8)

    def check(inputs, target):
        loss = jax.block_until_ready(edice_loss_full(inputs, target))
        ref = _reference(inputs, target)
        # 1e-3 tolerance: pl.reciprocal(approx=True) perturbs softmax
        # normalization slightly; everything else is exact f32.
        assert jnp.allclose(loss, ref, rtol=1e-3, atol=1e-3), (loss, ref)

    # Case 1: small NCHW logits + integer class labels (batch=2, classes=4, 16x16).
    x1 = jax.random.normal(keys[0], (2, 4, 16, 16), dtype=jnp.float32)
    t1 = jax.random.randint(keys[1], (2, 16, 16), 0, 4, dtype=jnp.int32)
    check(x1, t1)

    # Case 2: multi-row-tile grid (64 lane-rows -> two 32-row tiles, batch=1).
    x2 = jax.random.normal(keys[2], (1, 4, 64, 128), dtype=jnp.float32)
    t2 = jax.random.randint(keys[3], (1, 64, 128), 0, 4, dtype=jnp.int32)
    check(x2, t2)

    # Case 3: W not a multiple of 128 -> lane-dense reshape + padded-pixel mask.
    x3 = jax.random.normal(keys[4], (1, 3, 7, 24), dtype=jnp.float32)
    t3 = jax.random.randint(keys[5], (1, 7, 24), 0, 3, dtype=jnp.int32)
    check(x3, t3)

    # Case 4: bf16 logits streamed in native dtype (upcast in-register).
    x4 = jax.random.normal(keys[6], (2, 4, 32, 128), dtype=jnp.bfloat16)
    t4 = jax.random.randint(keys[7], (2, 32, 128), 0, 4, dtype=jnp.int32)
    check(x4, t4)

    print("KERNEL_OK")
</pallas_src>

<mosaic_0001>
module attributes {stable_mosaic.version = 11 : i64} {
  func.func @_sums_kernel(%arg0: i32, %arg1: i32, %arg2: memref<1x4x2x128xf32, #tpu.memory_space<vmem>>, %arg3: memref<1x2x128xi8, #tpu.memory_space<vmem>>, %arg4: memref<1x1x16x128xf32, #tpu.memory_space<vmem>>) attributes {dimension_semantics = [#tpu.dimension_semantics<parallel>, #tpu.dimension_semantics<parallel>], iteration_bounds = array<i64: 2, 1>, scalar_prefetch = 0 : i64, scratch_operands = 0 : i64, tpu.core_type = #tpu.core_type<tc>, window_params = [{transform_indices = @transform_0, window_bounds = array<i64: 1, 4, 2, 128>}, {transform_indices = @transform_1, window_bounds = array<i64: 1, 2, 128>}, {transform_indices = @transform_2, window_bounds = array<i64: 1, 1, 16, 128>}]} {
    %c0 = arith.constant 0 : index
    %c0_0 = arith.constant 0 : index
    %c0_1 = arith.constant 0 : index
    %c0_2 = arith.constant 0 : index
    %0 = vector.load %arg2[%c0, %c0_0, %c0_1, %c0_2] : memref<1x4x2x128xf32, #tpu.memory_space<vmem>>, vector<1x4x2x128xf32>
    %c0_3 = arith.constant 0 : index
    %c0_4 = arith.constant 0 : index
    %c0_5 = arith.constant 0 : index
    %1 = vector.load %arg3[%c0_3, %c0_4, %c0_5] : memref<1x2x128xi8, #tpu.memory_space<vmem>>, vector<1x2x128xi8>
    %2 = arith.extsi %1 : vector<1x2x128xi8> to vector<1x2x128xi32>
    %cst = arith.constant dense<0xFF800000> : vector<1x2x128xf32>
    %3 = vector.multi_reduction <maximumf>, %0, %cst [1] : vector<1x4x2x128xf32> to vector<1x2x128xf32>
    %4 = vector.shape_cast %3 : vector<1x2x128xf32> to vector<1x1x2x128xf32>
    %5 = vector.broadcast %4 : vector<1x1x2x128xf32> to vector<1x4x2x128xf32>
    %6 = arith.subf %0, %5 : vector<1x4x2x128xf32>
    %7 = math.exp %6 : vector<1x4x2x128xf32>
    %cst_6 = arith.constant dense<0.000000e+00> : vector<1x2x128xf32>
    %8 = vector.multi_reduction <add>, %7, %cst_6 [1] : vector<1x4x2x128xf32> to vector<1x2x128xf32>
    %9 = tpu.reciprocal %8 {approx = true} : vector<1x2x128xf32> -> vector<1x2x128xf32>
    %10 = math.log %8 : vector<1x2x128xf32>
    %11 = arith.addf %3, %10 : vector<1x2x128xf32>
    %12 = vector.extract_strided_slice %0 {offsets = [0, 0, 0, 0], sizes = [1, 1, 2, 128], strides = [1, 1, 1, 1]} : vector<1x4x2x128xf32> to vector<1x1x2x128xf32>
    %13 = vector.shape_cast %12 : vector<1x1x2x128xf32> to vector<1x2x128xf32>
    %14 = vector.extract_strided_slice %7 {offsets = [0, 0, 0, 0], sizes = [1, 1, 2, 128], strides = [1, 1, 1, 1]} : vector<1x4x2x128xf32> to vector<1x1x2x128xf32>
    %15 = vector.shape_cast %14 : vector<1x1x2x128xf32> to vector<1x2x128xf32>
    %16 = arith.mulf %15, %9 : vector<1x2x128xf32>
    %c0_i32 = arith.constant 0 : i32
    %17 = vector.broadcast %c0_i32 : i32 to vector<1x2x128xi32>
    %18 = arith.cmpi eq, %2, %17 : vector<1x2x128xi32>
    %cst_7 = arith.constant 0.000000e+00 : f32
    %19 = vector.broadcast %cst_7 : f32 to vector<1x2x128xf32>
    %20 = arith.select %18, %16, %19 : vector<1x2x128xi1>, vector<1x2x128xf32>
    %cst_8 = arith.constant dense<0.000000e+00> : vector<1x128xf32>
    %21 = vector.multi_reduction <add>, %20, %cst_8 [1] : vector<1x2x128xf32> to vector<1x128xf32>
    %22 = arith.mulf %16, %16 : vector<1x2x128xf32>
    %cst_9 = arith.constant dense<0.000000e+00> : vector<1x128xf32>
    %23 = vector.multi_reduction <add>, %22, %cst_9 [1] : vector<1x2x128xf32> to vector<1x128xf32>
    %cst_10 = arith.constant 1.000000e+00 : f32
    %cst_11 = arith.constant 0.000000e+00 : f32
    %24 = vector.broadcast %cst_10 : f32 to vector<1x2x128xf32>
    %25 = vector.broadcast %cst_11 : f32 to vector<1x2x128xf32>
    %26 = arith.select %18, %24, %25 : vector<1x2x128xi1>, vector<1x2x128xf32>
    %cst_12 = arith.constant dense<0.000000e+00> : vector<1x128xf32>
    %27 = vector.multi_reduction <add>, %26, %cst_12 [1] : vector<1x2x128xf32> to vector<1x128xf32>
    %28 = arith.subf %11, %13 : vector<1x2x128xf32>
    %cst_13 = arith.constant 0.000000e+00 : f32
    %29 = vector.broadcast %cst_13 : f32 to vector<1x2x128xf32>
    %30 = arith.select %18, %28, %29 : vector<1x2x128xi1>, vector<1x2x128xf32>
    %cst_14 = arith.constant dense<0.000000e+00> : vector<1x128xf32>
    %31 = vector.multi_reduction <add>, %30, %cst_14 [1] : vector<1x2x128xf32> to vector<1x128xf32>
    %32 = vector.extract_strided_slice %0 {offsets = [0, 1, 0, 0], sizes = [1, 1, 2, 128], strides = [1, 1, 1, 1]} : vector<1x4x2x128xf32> to vector<1x1x2x128xf32>
    %33 = vector.shape_cast %32 : vector<1x1x2x128xf32> to vector<1x2x128xf32>
    %34 = vector.extract_strided_slice %7 {offsets = [0, 1, 0, 0], sizes = [1, 1, 2, 128], strides = [1, 1, 1, 1]} : vector<1x4x2x128xf32> to vector<1x1x2x128xf32>
    %35 = vector.shape_cast %34 : vector<1x1x2x128xf32> to vector<1x2x128xf32>
    %36 = arith.mulf %35, %9 : vector<1x2x128xf32>
    %c1_i32 = arith.constant 1 : i32
    %37 = vector.broadcast %c1_i32 : i32 to vector<1x2x128xi32>
    %38 = arith.cmpi eq, %2, %37 : vector<1x2x128xi32>
    %cst_15 = arith.constant 0.000000e+00 : f32
    %39 = vector.broadcast %cst_15 : f32 to vector<1x2x128xf32>
    %40 = arith.select %38, %36, %39 : vector<1x2x128xi1>, vector<1x2x128xf32>
    %cst_16 = arith.constant dense<0.000000e+00> : vector<1x128xf32>
    %41 = vector.multi_reduction <add>, %40, %cst_16 [1] : vector<1x2x128xf32> to vector<1x128xf32>
    %42 = arith.mulf %36, %36 : vector<1x2x128xf32>
    %cst_17 = arith.constant dense<0.000000e+00> : vector<1x128xf32>
    %43 = vector.multi_reduction <add>, %42, %cst_17 [1] : vector<1x2x128xf32> to vector<1x128xf32>
    %cst_18 = arith.constant 1.000000e+00 : f32
    %cst_19 = arith.constant 0.000000e+00 : f32
    %44 = vector.broadcast %cst_18 : f32 to vector<1x2x128xf32>
    %45 = vector.broadcast %cst_19 : f32 to vector<1x2x128xf32>
    %46 = arith.select %38, %44, %45 : vector<1x2x128xi1>, vector<1x2x128xf32>
    %cst_20 = arith.constant dense<0.000000e+00> : vector<1x128xf32>
    %47 = vector.multi_reduction <add>, %46, %cst_20 [1] : vector<1x2x128xf32> to vector<1x128xf32>
    %48 = arith.subf %11, %33 : vector<1x2x128xf32>
    %cst_21 = arith.constant 0.000000e+00 : f32
    %49 = vector.broadcast %cst_21 : f32 to vector<1x2x128xf32>
    %50 = arith.select %38, %48, %49 : vector<1x2x128xi1>, vector<1x2x128xf32>
    %cst_22 = arith.constant dense<0.000000e+00> : vector<1x128xf32>
    %51 = vector.multi_reduction <add>, %50, %cst_22 [1] : vector<1x2x128xf32> to vector<1x128xf32>
    %52 = vector.extract_strided_slice %0 {offsets = [0, 2, 0, 0], sizes = [1, 1, 2, 128], strides = [1, 1, 1, 1]} : vector<1x4x2x128xf32> to vector<1x1x2x128xf32>
    %53 = vector.shape_cast %52 : vector<1x1x2x128xf32> to vector<1x2x128xf32>
    %54 = vector.extract_strided_slice %7 {offsets = [0, 2, 0, 0], sizes = [1, 1, 2, 128], strides = [1, 1, 1, 1]} : vector<1x4x2x128xf32> to vector<1x1x2x128xf32>
    %55 = vector.shape_cast %54 : vector<1x1x2x128xf32> to vector<1x2x128xf32>
    %56 = arith.mulf %55, %9 : vector<1x2x128xf32>
    %c2_i32 = arith.constant 2 : i32
    %57 = vector.broadcast %c2_i32 : i32 to vector<1x2x128xi32>
    %58 = arith.cmpi eq, %2, %57 : vector<1x2x128xi32>
    %cst_23 = arith.constant 0.000000e+00 : f32
    %59 = vector.broadcast %cst_23 : f32 to vector<1x2x128xf32>
    %60 = arith.select %58, %56, %59 : vector<1x2x128xi1>, vector<1x2x128xf32>
    %cst_24 = arith.constant dense<0.000000e+00> : vector<1x128xf32>
    %61 = vector.multi_reduction <add>, %60, %cst_24 [1] : vector<1x2x128xf32> to vector<1x128xf32>
    %62 = arith.mulf %56, %56 : vector<1x2x128xf32>
    %cst_25 = arith.constant dense<0.000000e+00> : vector<1x128xf32>
    %63 = vector.multi_reduction <add>, %62, %cst_25 [1] : vector<1x2x128xf32> to vector<1x128xf32>
    %cst_26 = arith.constant 1.000000e+00 : f32
    %cst_27 = arith.constant 0.000000e+00 : f32
    %64 = vector.broadcast %cst_26 : f32 to vector<1x2x128xf32>
    %65 = vector.broadcast %cst_27 : f32 to vector<1x2x128xf32>
    %66 = arith.select %58, %64, %65 : vector<1x2x128xi1>, vector<1x2x128xf32>
    %cst_28 = arith.constant dense<0.000000e+00> : vector<1x128xf32>
    %67 = vector.multi_reduction <add>, %66, %cst_28 [1] : vector<1x2x128xf32> to vector<1x128xf32>
    %68 = arith.subf %11, %53 : vector<1x2x128xf32>
    %cst_29 = arith.constant 0.000000e+00 : f32
    %69 = vector.broadcast %cst_29 : f32 to vector<1x2x128xf32>
    %70 = arith.select %58, %68, %69 : vector<1x2x128xi1>, vector<1x2x128xf32>
    %cst_30 = arith.constant dense<0.000000e+00> : vector<1x128xf32>
    %71 = vector.multi_reduction <add>, %70, %cst_30 [1] : vector<1x2x128xf32> to vector<1x128xf32>
    %72 = vector.extract_strided_slice %0 {offsets = [0, 3, 0, 0], sizes = [1, 1, 2, 128], strides = [1, 1, 1, 1]} : vector<1x4x2x128xf32> to vector<1x1x2x128xf32>
    %73 = vector.shape_cast %72 : vector<1x1x2x128xf32> to vector<1x2x128xf32>
    %74 = vector.extract_strided_slice %7 {offsets = [0, 3, 0, 0], sizes = [1, 1, 2, 128], strides = [1, 1, 1, 1]} : vector<1x4x2x128xf32> to vector<1x1x2x128xf32>
    %75 = vector.shape_cast %74 : vector<1x1x2x128xf32> to vector<1x2x128xf32>
    %76 = arith.mulf %75, %9 : vector<1x2x128xf32>
    %c3_i32 = arith.constant 3 : i32
    %77 = vector.broadcast %c3_i32 : i32 to vector<1x2x128xi32>
    %78 = arith.cmpi eq, %2, %77 : vector<1x2x128xi32>
    %cst_31 = arith.constant 0.000000e+00 : f32
    %79 = vector.broadcast %cst_31 : f32 to vector<1x2x128xf32>
    %80 = arith.select %78, %76, %79 : vector<1x2x128xi1>, vector<1x2x128xf32>
    %cst_32 = arith.constant dense<0.000000e+00> : vector<1x128xf32>
    %81 = vector.multi_reduction <add>, %80, %cst_32 [1] : vector<1x2x128xf32> to vector<1x128xf32>
    %82 = arith.mulf %76, %76 : vector<1x2x128xf32>
    %cst_33 = arith.constant dense<0.000000e+00> : vector<1x128xf32>
    %83 = vector.multi_reduction <add>, %82, %cst_33 [1] : vector<1x2x128xf32> to vector<1x128xf32>
    %cst_34 = arith.constant 1.000000e+00 : f32
    %cst_35 = arith.constant 0.000000e+00 : f32
    %84 = vector.broadcast %cst_34 : f32 to vector<1x2x128xf32>
    %85 = vector.broadcast %cst_35 : f32 to vector<1x2x128xf32>
    %86 = arith.select %78, %84, %85 : vector<1x2x128xi1>, vector<1x2x128xf32>
    %cst_36 = arith.constant dense<0.000000e+00> : vector<1x128xf32>
    %87 = vector.multi_reduction <add>, %86, %cst_36 [1] : vector<1x2x128xf32> to vector<1x128xf32>
    %88 = arith.subf %11, %73 : vector<1x2x128xf32>
    %cst_37 = arith.constant 0.000000e+00 : f32
    %89 = vector.broadcast %cst_37 : f32 to vector<1x2x128xf32>
    %90 = arith.select %78, %88, %89 : vector<1x2x128xi1>, vector<1x2x128xf32>
    %cst_38 = arith.constant dense<0.000000e+00> : vector<1x128xf32>
    %91 = vector.multi_reduction <add>, %90, %cst_38 [1] : vector<1x2x128xf32> to vector<1x128xf32>
    %92 = tpu.concatenate %21, %41, %61, %81, %23, %43, %63, %83, %27, %47, %67, %87, %31, %51, %71, %91 in 0 : vector<1x128xf32>, vector<1x128xf32>, vector<1x128xf32>, vector<1x128xf32>, vector<1x128xf32>, vector<1x128xf32>, vector<1x128xf32>, vector<1x128xf32>, vector<1x128xf32>, vector<1x128xf32>, vector<1x128xf32>, vector<1x128xf32>, vector<1x128xf32>, vector<1x128xf32>, vector<1x128xf32>, vector<1x128xf32> -> vector<16x128xf32>
    %93 = vector.shape_cast %92 : vector<16x128xf32> to vector<1x1x16x128xf32>
    %c0_39 = arith.constant 0 : index
    %c0_40 = arith.constant 0 : index
    %c0_41 = arith.constant 0 : index
    %c0_42 = arith.constant 0 : index
    %94 = vector.load %arg4[%c0_39, %c0_40, %c0_41, %c0_42] : memref<1x1x16x128xf32, #tpu.memory_space<vmem>>, vector<1x1x16x128xf32>
    tpu.vector_store %arg4[%c0_39, %c0_40, %c0_41, %c0_42], %93 {strides = array<i32>} : memref<1x1x16x128xf32, #tpu.memory_space<vmem>>, vector<1x1x16x128xf32>,
    return
  }
  func.func @transform_0(%arg0: i32, %arg1: i32) -> (i32, i32, i32, i32) {
    %c0_i32 = arith.constant 0 : i32
    %c0_i32_0 = arith.constant 0 : i32
    %c0_i32_1 = arith.constant 0 : i32
    return %arg0, %c0_i32, %arg1, %c0_i32_0 : i32, i32, i32, i32
  }
  func.func @transform_1(%arg0: i32, %arg1: i32) -> (i32, i32, i32) {
    %c0_i32 = arith.constant 0 : i32
    %c0_i32_0 = arith.constant 0 : i32
    return %arg0, %arg1, %c0_i32 : i32, i32, i32
  }
  func.func @transform_2(%arg0: i32, %arg1: i32) -> (i32, i32, i32, i32) {
    %c0_i32 = arith.constant 0 : i32
    %c0_i32_0 = arith.constant 0 : i32
    %c0_i32_1 = arith.constant 0 : i32
    return %arg0, %arg1, %c0_i32, %c0_i32_0 : i32, i32, i32, i32
  }
}

</mosaic_0001>

<llo_original>
// kernel: edice_loss_full.1
$region0: #{edice_loss_full.1}
  #allocation0 [shape = 'u32[]', space=smem, size = 0x4, offset = 0x4, fixed_abs, tag = 'smem constant byte address 0x4 - core index']
  #allocation1 [shape = 'u32[144,128]{1,0:T(1,128)}', space=vmem, size = 0x12000, scoped, tag = 'internal scratch']
  %s0 = inlined_call_operand.vmem [shape: f32[2,4,2,128], index: 0, kind: input, shape index: {}]
  %s1 = inlined_call_operand.vmem [shape: s8[2,2,128], index: 1, kind: input, shape index: {}]
  %s2 = inlined_call_operand.vmem [shape: f32[2,1,16,128], index: 2, kind: output, shape index: {}]
  %s3 = sld [smem:[#allocation0]]
  $region41: #{edice_loss_full.1} parent=0
    _
  %s5 = ssub.s32 1, %s3
  %s6 = scalar_select 0, %s5, %s3
  loop: start=0, step=1, limit=4
  $region2: #{edice_loss_full.1} parent=0 // loop_pre_header
    _
  $region3: #{edice_loss_full.1} parent=0 // loop_header
    %s8 = sphi 0, %s12
    %p9 = scmp.ge.s32.totalorder %s8, 4
    %s15 = sphi 0, %s27
    %s16 = sphi 0, %s23
    %s17 = sphi 0, %s15
    %s18 = sphi 0, %s16
    %s19 = sphi 0, %s17
    %s20 = sphi 0, %s18
    %s32 = sphi 0, %s34
    %s35 = sphi 0, %s32
    %s36 = sphi 0, %s35
    %s52 = sphi 0, %s36
    %s60 = sphi 0, %s62
    %s63 = sphi 0, %s60
    %s64 = sphi 0, %s63
    %s80 = sphi 0, %s64
    %s88 = sphi 0, %s90
    %s91 = sphi 0, %s88
    %s92 = sphi 0, %s91
    %s108 = sphi 0, %s92
  $region4: #{edice_loss_full.1} parent=0 // loop_header_branch
    %11 = sbr.rel (%p9) target = $region8
  $region5: #{edice_loss_full.1} parent=0 // loop_body
    %s13 = ssub.s32 %s8, 1
    %s14 = ssub.s32 %s8, 2
    %s21 = sadd.s32 1, %s16
    %p22 = scmp.ge.s32.totalorder %s21, 1
    %s23 = scalar_select %p22, 0, %s21
    %s24 = sadd.s32 1, %s15
    %s25 = scalar_select %p22, %s24, %s15
    %p26 = scmp.ge.s32.totalorder %s25, 2
    %s27 = scalar_select %p26, 0, %s25
    %s28 = ssub.s32 %s15, %s27
    %s29 = ssub.s32 %s16, %s23
    %s30 = sor.u32 %s28, %s29
    %p31 = scmp.eq.s32.totalorder %s30, 0
    %s33 = sadd.s32 %s32, 1
    %s34 = scalar_select %p31, %s32, %s33
    %p37 = pneg %p31
    %p38 = scmp.eq.s32.totalorder %s8, 1
    %p39 = por %p37, %p38
    %p40 = scmp.ne.s32.totalorder %s32, %s35
    %p41 = scmp.eq.s32.totalorder %s8, 0
    %p42 = por %p40, %p41
    %p43 = scmp.ne.s32.totalorder %s32, %s35
    %p44 = scmp.eq.s32.totalorder %s13, 1
    %p45 = por %p43, %p44
    %p46 = scmp.ne.s32.totalorder %s35, %s36
    %p47 = scmp.eq.s32.totalorder %s13, 0
    %p48 = por %p46, %p47
    %p49 = scmp.ne.s32.totalorder %s35, %s36
    %p50 = scmp.eq.s32.totalorder %s14, 1
    %p51 = por %p49, %p50
    %p53 = scmp.ne.s32.totalorder %s36, %s52
    %p54 = scmp.eq.s32.totalorder %s14, 0
    %p55 = por %p53, %p54
    %s56 = ssub.s32 %s15, %s27
    %s57 = ssub.s32 %s16, %s23
    %s58 = sor.u32 %s56, %s57
    %p59 = scmp.eq.s32.totalorder %s58, 0
    %s61 = sadd.s32 %s60, 1
    %s62 = scalar_select %p59, %s60, %s61
    %p65 = pneg %p59
    %p66 = scmp.eq.s32.totalorder %s8, 1
    %p67 = por %p65, %p66
    %p68 = scmp.ne.s32.totalorder %s60, %s63
    %p69 = scmp.eq.s32.totalorder %s8, 0
    %p70 = por %p68, %p69
    %p71 = scmp.ne.s32.totalorder %s60, %s63
    %p72 = scmp.eq.s32.totalorder %s13, 1
    %p73 = por %p71, %p72
    %p74 = scmp.ne.s32.totalorder %s63, %s64
    %p75 = scmp.eq.s32.totalorder %s13, 0
    %p76 = por %p74, %p75
    %p77 = scmp.ne.s32.totalorder %s63, %s64
    %p78 = scmp.eq.s32.totalorder %s14, 1
    %p79 = por %p77, %p78
    %p81 = scmp.ne.s32.totalorder %s64, %s80
    %p82 = scmp.eq.s32.totalorder %s14, 0
    %p83 = por %p81, %p82
    %s84 = ssub.s32 %s15, %s27
    %s85 = ssub.s32 %s16, %s23
    %s86 = sor.u32 %s84, %s85
    %p87 = scmp.eq.s32.totalorder %s86, 0
    %s89 = sadd.s32 %s88, 1
    %s90 = scalar_select %p87, %s88, %s89
    %p93 = pneg %p87
    %p94 = scmp.eq.s32.totalorder %s8, 1
    %p95 = por %p93, %p94
    %p96 = scmp.ne.s32.totalorder %s88, %s91
    %p97 = scmp.eq.s32.totalorder %s8, 0
    %p98 = por %p96, %p97
    %p99 = scmp.ne.s32.totalorder %s88, %s91
    %p100 = scmp.eq.s32.totalorder %s13, 1
    %p101 = por %p99, %p100
    %p102 = scmp.ne.s32.totalorder %s91, %s92
    %p103 = scmp.eq.s32.totalorder %s13, 0
    %p104 = por %p102, %p103
    %p105 = scmp.ne.s32.totalorder %s91, %s92
    %p106 = scmp.eq.s32.totalorder %s14, 1
    %p107 = por %p105, %p106
    %p109 = scmp.ne.s32.totalorder %s92, %s108
    %p110 = scmp.eq.s32.totalorder %s14, 0
    %p111 = por %p109, %p110
    %p112 = scmp.le.s32.totalorder 1, %s8
    %p113 = scmp.lt.s32.totalorder %s8, 3
    %p114 = pnand %p112, %p113
    %p115 = pneg %p114
    // Predicated region
    $region9: #{edice_loss_full.1} parent=5 // pred_check
      _
    $region10: #{edice_loss_full.1} parent=5 // pred_check_branch
      %117 = sbr.rel (%p114) target = $region12
    $region11: #{edice_loss_full.1} parent=5 // pred_region
      %s118 = ssub.s32 %s8, 1
    $region12: #{edice_loss_full.1} parent=5 // pred_fallthru
      _
    %p119 = scmp.lt.s32.totalorder %s8, 2
    // Predicated region
    $region13: #{edice_loss_full.1} parent=5 // pred_check
      %p120 = pneg %p119
    $region14: #{edice_loss_full.1} parent=5 // pred_check_branch
      %122 = sbr.rel (%p120) target = $region16
    $region15: #{edice_loss_full.1} parent=5 // pred_region
      // Predicated region
      $region17: #{edice_loss_full.1} parent=15 // pred_check
        %p123 = pneg %p42
      $region18: #{edice_loss_full.1} parent=15 // pred_check_branch
        %125 = sbr.rel (%p123) target = $region20
      $region19: #{edice_loss_full.1} parent=15 // pred_region
        %p126 = scmp.lt.s32.totalorder %s15, 1
        %s127 = scalar_select %p126, %s15, 1
        %p128 = scmp.lt.s32.totalorder %s16, 0
        %s129 = scalar_select %p128, %s16, 0
        %s130 = smul.addr %s127, 4
        %s131 = sadd.s32 %s129, %s130
        %s132 = smul.addr %s131, 2
        %s133 = scalar_lea.vmem %s0, %s132
      $region20: #{edice_loss_full.1} parent=15 // pred_fallthru
        _
      // Predicated region
      $region21: #{edice_loss_full.1} parent=15 // pred_check
        %p134 = pneg %p70
      $region22: #{edice_loss_full.1} parent=15 // pred_check_branch
        %136 = sbr.rel (%p134) target = $region24
      $region23: #{edice_loss_full.1} parent=15 // pred_region
        %p137 = scmp.lt.s32.totalorder %s15, 1
        %s138 = scalar_select %p137, %s15, 1
        %p139 = scmp.lt.s32.totalorder %s16, 0
        %s140 = scalar_select %p139, %s16, 0
        %s141 = sadd.s32 %s140, %s138
        %s142 = scalar_lea.vmem %s1, %s141
      $region24: #{edice_loss_full.1} parent=15 // pred_fallthru
        _
    $region16: #{edice_loss_full.1} parent=5 // pred_fallthru
      _
    %p143 = scmp.le.s32.totalorder 1, %s8
    %p144 = scmp.lt.s32.totalorder %s8, 3
    %p145 = pnand %p143, %p144
    %p146 = pneg %p145
    // Predicated region
    $region25: #{edice_loss_full.1} parent=5 // pred_check
      _
    $region26: #{edice_loss_full.1} parent=5 // pred_check_branch
      %148 = sbr.rel (%p145) target = $region28
    $region27: #{edice_loss_full.1} parent=5 // pred_region
      %s149 = ssub.s32 %s8, 1
      %p150 = scmp.lt.s32.totalorder %s17, 1
      %s151 = scalar_select %p150, %s17, 1
      %p152 = scmp.lt.s32.totalorder %s18, 0
      %s153 = scalar_select %p152, %s18, 0
      %s154 = smul.addr %s151, 4
      %s155 = sadd.s32 %s153, %s154
      %s156 = smul.addr %s155, 2
      %s157 = scalar_lea.vmem %s0, %s156
      %p158 = pneg %p48
      %p159 = pneg %p45
      %p160 = scmp.lt.s32.totalorder %s17, 1
      %s161 = scalar_select %p160, %s17, 1
      %p162 = scmp.lt.s32.totalorder %s18, 0
      %s163 = scalar_select %p162, %s18, 0
      %s164 = sadd.s32 %s163, %s161
      %s165 = scalar_lea.vmem %s1, %s164
      %p166 = pneg %p76
      %p167 = pneg %p73
      %p168 = pneg %p104
      %p169 = pneg %p101
      %p170 = scmp.lt.s32.totalorder %s17, 1
      %s171 = scalar_select %p170, %s17, 1
      %p172 = scmp.lt.s32.totalorder %s18, 0
      %s173 = scalar_select %p172, %s18, 0
      %s174 = smul.addr %s173, 2
      %s175 = smul.addr %s171, 2
      %s176 = sadd.s32 %s174, %s175
      %s177 = smul.addr %s176, 8
      %s178 = scalar_lea.vmem %s2, %s177
      %p179 = scmp.lt.s32.totalorder %s17, 1
      %s180 = scalar_select %p179, %s17, 1
      %p181 = scmp.lt.s32.totalorder %s18, 0
      %s182 = scalar_select %p181, %s18, 0
      %s183 = smul.addr %s180, 4
      %s184 = sadd.s32 %s182, %s183
      %s185 = smul.addr %s184, 2
      %s186 = scalar_lea.vmem %s0, %s185
      %p187 = scmp.lt.s32.totalorder %s17, 1
      %s188 = scalar_select %p187, %s17, 1
      %p189 = scmp.lt.s32.totalorder %s18, 0
      %s190 = scalar_select %p189, %s18, 0
      %s191 = sadd.s32 %s190, %s188
      %s192 = scalar_lea.vmem %s1, %s191
      %p193 = scmp.lt.s32.totalorder %s17, 1
      %s194 = scalar_select %p193, %s17, 1
      %p195 = scmp.lt.s32.totalorder %s18, 0
      %s196 = scalar_select %p195, %s18, 0
      %s197 = smul.addr %s196, 2
      %s198 = smul.addr %s194, 2
      %s199 = sadd.s32 %s197, %s198
      %s200 = smul.addr %s199, 8
      %s201 = scalar_lea.vmem %s2, %s200
      %v202 = vld [vmem:[%s186] sm:$0x3]
      %v203 = vld [vmem:[%s186 + $0x2] sm:$0x3]
      %v204 = vld [vmem:[%s186 + $0x4] sm:$0x3]
      %v205 = vld [vmem:[%s186 + $0x6] sm:$0x3]
      %v206 = vld [vmem:[%s192] sm:$0x1]
      %v207 = vunpack.c.0.s8 %v206
      %vm208 = vcmask 1041408
      %v209 = vsel %vm208, %v202, -inf
      %v210 = vsel %vm208, %v203, -inf
      %v211 = vsel %vm208, %v204, -inf
      %v212 = vsel %vm208, %v205, -inf
      %v213 = vmax.f32 %v209, %v210
      %v214 = vmax.f32 %v211, %v212
      %v215 = vmax.f32 %v213, %v214
      %v216 = vsub.f32 %v202, %v215
      %v217 = vsub.f32 %v203, %v215
      %v218 = vsub.f32 %v204, %v215
      %v219 = vsub.f32 %v205, %v215
      %v220 = vmul.f32 %v216, 1.442695
      %v221 = vpow.pop %v220
      %v222 = vmul.f32 %v217, 1.442695
      %v223 = vpow.pop %v222
      %v224 = vmul.f32 %v218, 1.442695
      %v225 = vpow.pop %v224
      %v226 = vmul.f32 %v219, 1.442695
      %v227 = vpow.pop %v226
      %v228 = vsel %vm208, %v221, 0.0
      %v229 = vsel %vm208, %v223, 0.0
      %v230 = vadd.f32 %v228, %v229
      %v231 = vsel %vm208, %v225, 0.0
      %v232 = vadd.f32 %v230, %v231
      %v233 = vsel %vm208, %v227, 0.0
      %v234 = vadd.f32 %v232, %v233
      %v235 = vrcp.pop %v234
      %v236 = vlog2.pop %v234
      %v237 = vmul.f32 %v236, 0.6931472
      %v238 = vadd.f32 %v215, %v237
      %v239 = vmul.f32 %v221, %v235
      %vm240 = vcmp.eq.s32.totalorder %v207, 0
      %v241 = vsel %vm240, %v239, 0.0
      %v242 = vsel %vm208, %v241, 0.0
      %v243 = vrot.slane %v242, 4
      %v244 = vadd.f32 %v242, %v243
      %v245 = vrot.slane %v244, 2
      %v246 = vadd.f32 %v244, %v245
      %v247 = vrot.slane %v246, 1
      %v248 = vadd.f32 %v246, %v247
      %v249 = vmul.f32 %v239, %v239
      %v250 = vsel %vm208, %v249, 0.0
      %v251 = vrot.slane %v250, 4
      %v252 = vadd.f32 %v250, %v251
      %v253 = vrot.slane %v252, 2
      %v254 = vadd.f32 %v252, %v253
      %v255 = vrot.slane %v254, 1
      %v256 = vadd.f32 %v254, %v255
      %v257 = vsel %vm240, 1.0, 0.0
      %v258 = vsel %vm208, %v257, 0.0
      %v259 = vrot.slane %v258, 4
      %v260 = vadd.f32 %v258, %v259
      %v261 = vrot.slane %v260, 2
      %v262 = vadd.f32 %v260, %v261
      %v263 = vrot.slane %v262, 1
      %v264 = vadd.f32 %v262, %v263
      %v265 = vsub.f32 %v238, %v202
      %v266 = vsel %vm240, %v265, 0.0
      %v267 = vsel %vm208, %v266, 0.0
      %v268 = vrot.slane %v267, 4
      %v269 = vadd.f32 %v267, %v268
      %v270 = vrot.slane %v269, 2
      %v271 = vadd.f32 %v269, %v270
      %v272 = vrot.slane %v271, 1
      %v273 = vadd.f32 %v271, %v272
      %v274 = vmul.f32 %v223, %v235
      %vm275 = vcmp.eq.s32.totalorder %v207, 1
      %v276 = vsel %vm275, %v274, 0.0
      %v277 = vsel %vm208, %v276, 0.0
      %v278 = vrot.slane %v277, 4
      %v279 = vadd.f32 %v277, %v278
      %v280 = vrot.slane %v279, 2
      %v281 = vadd.f32 %v279, %v280
      %v282 = vrot.slane %v281, 1
      %v283 = vadd.f32 %v281, %v282
      %v284 = vmul.f32 %v274, %v274
      %v285 = vsel %vm208, %v284, 0.0
      %v286 = vrot.slane %v285, 4
      %v287 = vadd.f32 %v285, %v286
      %v288 = vrot.slane %v287, 2
      %v289 = vadd.f32 %v287, %v288
      %v290 = vrot.slane %v289, 1
      %v291 = vadd.f32 %v289, %v290
      %v292 = vsel %vm275, 1.0, 0.0
      %v293 = vsel %vm208, %v292, 0.0
      %v294 = vrot.slane %v293, 4
      %v295 = vadd.f32 %v293, %v294
      %v296 = vrot.slane %v295, 2
      %v297 = vadd.f32 %v295, %v296
      %v298 = vrot.slane %v297, 1
      %v299 = vadd.f32 %v297, %v298
      %v300 = vsub.f32 %v238, %v203
      %v301 = vsel %vm275, %v300, 0.0
      %v302 = vsel %vm208, %v301, 0.0
      %v303 = vrot.slane %v302, 4
      %v304 = vadd.f32 %v302, %v303
      %v305 = vrot.slane %v304, 2
      %v306 = vadd.f32 %v304, %v305
      %v307 = vrot.slane %v306, 1
      %v308 = vadd.f32 %v306, %v307
      %v309 = vmul.f32 %v225, %v235
      %vm310 = vcmp.eq.s32.totalorder %v207, 2
      %v311 = vsel %vm310, %v309, 0.0
      %v312 = vsel %vm208, %v311, 0.0
      %v313 = vrot.slane %v312, 4
      %v314 = vadd.f32 %v312, %v313
      %v315 = vrot.slane %v314, 2
      %v316 = vadd.f32 %v314, %v315
      %v317 = vrot.slane %v316, 1
      %v318 = vadd.f32 %v316, %v317
      %v319 = vmul.f32 %v309, %v309
      %v320 = vsel %vm208, %v319, 0.0
      %v321 = vrot.slane %v320, 4
      %v322 = vadd.f32 %v320, %v321
      %v323 = vrot.slane %v322, 2
      %v324 = vadd.f32 %v322, %v323
      %v325 = vrot.slane %v324, 1
      %v326 = vadd.f32 %v324, %v325
      %v327 = vsel %vm310, 1.0, 0.0
      %v328 = vsel %vm208, %v327, 0.0
      %v329 = vrot.slane %v328, 4
      %v330 = vadd.f32 %v328, %v329
      %v331 = vrot.slane %v330, 2
      %v332 = vadd.f32 %v330, %v331
      %v333 = vrot.slane %v332, 1
      %v334 = vadd.f32 %v332, %v333
      %v335 = vsub.f32 %v238, %v204
      %v336 = vsel %vm310, %v335, 0.0
      %v337 = vsel %vm208, %v336, 0.0
      %v338 = vrot.slane %v337, 4
      %v339 = vadd.f32 %v337, %v338
      %v340 = vrot.slane %v339, 2
      %v341 = vadd.f32 %v339, %v340
      %v342 = vrot.slane %v341, 1
      %v343 = vadd.f32 %v341, %v342
      %v344 = vmul.f32 %v227, %v235
      %vm345 = vcmp.eq.s32.totalorder %v207, 3
      %v346 = vsel %vm345, %v344, 0.0
      %v347 = vsel %vm208, %v346, 0.0
      %v348 = vrot.slane %v347, 4
      %v349 = vadd.f32 %v347, %v348
      %v350 = vrot.slane %v349, 2
      %v351 = vadd.f32 %v349, %v350
      %v352 = vrot.slane %v351, 1
      %v353 = vadd.f32 %v351, %v352
      %v354 = vmul.f32 %v344, %v344
      %v355 = vsel %vm208, %v354, 0.0
      %v356 = vrot.slane %v355, 4
      %v357 = vadd.f32 %v355, %v356
      %v358 = vrot.slane %v357, 2
      %v359 = vadd.f32 %v357, %v358
      %v360 = vrot.slane %v359, 1
      %v361 = vadd.f32 %v359, %v360
      %v362 = vsel %vm345, 1.0, 0.0
      %v363 = vsel %vm208, %v362, 0.0
      %v364 = vrot.slane %v363, 4
      %v365 = vadd.f32 %v363, %v364
      %v366 = vrot.slane %v365, 2
      %v367 = vadd.f32 %v365, %v366
      %v368 = vrot.slane %v367, 1
      %v369 = vadd.f32 %v367, %v368
      %v370 = vsub.f32 %v238, %v205
      %v371 = vsel %vm345, %v370, 0.0
      %v372 = vsel %vm208, %v371, 0.0
      %v373 = vrot.slane %v372, 4
      %v374 = vadd.f32 %v372, %v373
      %v375 = vrot.slane %v374, 2
      %v376 = vadd.f32 %v374, %v375
      %v377 = vrot.slane %v376, 1
      %v378 = vadd.f32 %v376, %v377
      %vm379 = vcmask 1040384
      %v380 = vsel %vm379, %v248, %v283
      %v381 = vsel %vm208, %v380, %v318
      %vm382 = vcmask 1042432
      %v383 = vsel %vm382, %v381, %v353
      %vm384 = vcmask 1043456
      %v385 = vsel %vm384, %v383, %v256
      %vm386 = vcmask 1044480
      %v387 = vsel %vm386, %v385, %v291
      %vm388 = vcmask 1045504
      %v389 = vsel %vm388, %v387, %v326
      %vm390 = vcmask 1046528
      %v391 = vsel %vm390, %v389, %v361
      %v392 = vsel %vm379, %v264, %v299
      %v393 = vsel %vm208, %v392, %v334
      %v394 = vsel %vm382, %v393, %v369
      %v395 = vsel %vm384, %v394, %v273
      %v396 = vsel %vm386, %v395, %v308
      %v397 = vsel %vm388, %v396, %v343
      %v398 = vsel %vm390, %v397, %v378
      %399 = vst [vmem:[%s201] sm:$0xff] %v391
      %400 = vst [vmem:[%s201 + $0x8] sm:$0xff] %v398
      %p401 = scmp.lt.s32.totalorder %s17, 1
      %s402 = scalar_select %p401, %s17, 1
      %p403 = scmp.lt.s32.totalorder %s18, 0
      %s404 = scalar_select %p403, %s18, 0
      %s405 = smul.addr %s404, 2
      %s406 = smul.addr %s402, 2
      %s407 = sadd.s32 %s405, %s406
      %s408 = smul.addr %s407, 8
      %s409 = scalar_lea.vmem %s2, %s408
      // Predicated region
      $region29: #{edice_loss_full.1} parent=27 // pred_check
        %p410 = pneg %p101
      $region30: #{edice_loss_full.1} parent=27 // pred_check_branch
        %412 = sbr.rel (%p410) target = $region32
      $region31: #{edice_loss_full.1} parent=27 // pred_region
        _
      $region32: #{edice_loss_full.1} parent=27 // pred_fallthru
        _
    $region28: #{edice_loss_full.1} parent=5 // pred_fallthru
      _
    %p413 = scmp.le.s32.totalorder 2, %s8
    // Predicated region
    $region33: #{edice_loss_full.1} parent=5 // pred_check
      %p414 = pneg %p413
    $region34: #{edice_loss_full.1} parent=5 // pred_check_branch
      %416 = sbr.rel (%p414) target = $region36
    $region35: #{edice_loss_full.1} parent=5 // pred_region
      %s417 = ssub.s32 %s8, 2
      // Predicated region
      $region37: #{edice_loss_full.1} parent=35 // pred_check
        %p418 = pneg %p107
      $region38: #{edice_loss_full.1} parent=35 // pred_check_branch
        %420 = sbr.rel (%p418) target = $region40
      $region39: #{edice_loss_full.1} parent=35 // pred_region
        %p421 = scmp.lt.s32.totalorder %s19, 1
        %s422 = scalar_select %p421, %s19, 1
        %p423 = scmp.lt.s32.totalorder %s20, 0
        %s424 = scalar_select %p423, %s20, 0
        %s425 = smul.addr %s424, 2
        %s426 = smul.addr %s422, 2
        %s427 = sadd.s32 %s425, %s426
        %s428 = smul.addr %s427, 8
        %s429 = scalar_lea.vmem %s2, %s428
      $region40: #{edice_loss_full.1} parent=35 // pred_fallthru
        _
    $region36: #{edice_loss_full.1} parent=5 // pred_fallthru
      _
  $region6: #{edice_loss_full.1} parent=0 // loop_footer
    %s12 = sadd.s32 1, %s8
  $region7: #{edice_loss_full.1} parent=0 // loop_footer_branch
    %7 = sbr.rel target = $region3
  $region8: #{edice_loss_full.1} parent=0 // loop_exit
    _

</llo_original>
